<compile_context>
chip_gen: v5e
topology: v5e:2x2
jax: 0.10.0
libtpu: 0.0.40
codegen_flags: <defaults>
</compile_context>

<pallas_src>
import jax
import jax.numpy as jnp
from jax import lax
from jax.experimental import pallas as pl
from jax.experimental.pallas import tpu as pltpu


def torch_model_kernel(ids_ref, u_ref, b_ref, out_ref):
    # ids_ref : (S, block_b) int32   -- token ids, batch on the lane axis
    # u_ref   : (1, V)       float32 -- folded, pre-scaled table row: (E @ w).T / S
    # b_ref   : (1, 1)       float32 -- classifier bias, in SMEM
    # out_ref : (1, block_b) float32 -- sigmoid(logits), batch on the lane axis
    S, Bb = ids_ref.shape
    V = u_ref.shape[1]

    # counts_vb[v, b] = #{s : ids[s, b] == v}, built one sequence step at a
    # time (no (S, V, B) one-hot). Out-of-range ids contribute zero (PyTorch
    # Embedding would raise; inputs here are always in range).
    vocab_iota = lax.broadcasted_iota(jnp.int32, (V, Bb), 0)

    def body(s, counts_vb):
        tok = ids_ref[pl.ds(s, 1), :]                                  # (1, Bb)
        return counts_vb + (vocab_iota == tok).astype(jnp.float32)     # (V, Bb)

    counts_vb = lax.fori_loop(0, S, body,
                              jnp.zeros((V, Bb), jnp.float32),
                              unroll=True)

    # Embedding lookup + mean-pool + Linear fused into one tiny matvec:
    #   logits[b] = sum_v counts[v, b] * (E @ w)[v] / S + bias
    logits = jnp.dot(u_ref[...], counts_vb,
                     preferred_element_type=jnp.float32) + b_ref[0, 0]  # (1, Bb)
    out_ref[...] = jax.nn.sigmoid(logits)


def _pick_block_b(B):
    # Largest lane-aligned block that evenly divides B; otherwise one block.
    for cand in (1024, 512, 256, 128):
        if B % cand == 0:
            return cand
    return B


def torch_model_forward(ids, emb_table, w, b):
    """ids: (B, S) int32 token indices. Returns (B, 1) float32 y_pred."""
    B, S = ids.shape
    V, D = emb_table.shape

    # Fold the Linear weight (and the 1/S mean-pool scale) into the table:
    #   mean_s E[ids[s]] @ w == counts @ (E @ w / S)
    u_row = (emb_table.astype(jnp.float32) @ w.astype(jnp.float32)).reshape(1, V)
    u_row = u_row * (1.0 / S)
    b_sm = b.reshape(1, 1).astype(jnp.float32)

    ids_t = ids.astype(jnp.int32).T                     # (S, B), batch on lanes

    block_b = _pick_block_b(B)
    grid = (B // block_b,)

    out_row = pl.pallas_call(
        torch_model_kernel,
        out_shape=jax.ShapeDtypeStruct((1, B), jnp.float32),
        grid=grid,
        in_specs=[
            pl.BlockSpec((S, block_b), lambda i: (0, i)),
            pl.BlockSpec((1, V), lambda i: (0, 0)),
            pl.BlockSpec(memory_space=pltpu.MemorySpace.SMEM),  # (1,1) bias
        ],
        out_specs=pl.BlockSpec((1, block_b), lambda i: (0, i)),
        compiler_params=pltpu.CompilerParams(
            dimension_semantics=("parallel",)),
    )(ids_t, u_row, b_sm)

    return out_row.reshape(B, 1)


if __name__ == "__main__":
    # Shapes implied by the module: vocab V=30, vector_dim D=32,
    # sentence_length S=8, batch B=2.
    V, D, S, B = 30, 32, 8, 2

    key = jax.random.PRNGKey(0)
    k_emb, k_w, k_b, k_ids = jax.random.split(key, 4)

    emb_table = jax.random.normal(k_emb, (V, D), dtype=jnp.float32)
    w = jax.random.normal(k_w, (D, 1), dtype=jnp.float32) * 0.1
    b = jax.random.normal(k_b, (1,), dtype=jnp.float32) * 0.1

    ids = jax.random.randint(k_ids, (B, S), 0, V, dtype=jnp.int32)

    y_pred = torch_model_forward(ids, emb_table, w, b)
    y_pred = jax.block_until_ready(y_pred)

    # Pure-JAX reference: embedding -> mean over seq -> linear -> sigmoid.
    ref = jax.nn.sigmoid(jnp.mean(emb_table[ids], axis=1) @ w + b)
    assert jnp.allclose(y_pred, ref, atol=1e-5), (y_pred, ref)

    print("KERNEL_OK")
</pallas_src>

<mosaic_0001>
module attributes {stable_mosaic.version = 11 : i64} {
  func.func @torch_model_kernel(%arg0: i32, %arg1: memref<8x2xi32, #tpu.memory_space<vmem>>, %arg2: memref<1x30xf32, #tpu.memory_space<vmem>>, %arg3: memref<1x1xf32, #tpu.memory_space<smem>>, %arg4: memref<1x2xf32, #tpu.memory_space<vmem>>) attributes {dimension_semantics = [#tpu.dimension_semantics<parallel>], iteration_bounds = array<i64: 1>, scalar_prefetch = 0 : i64, scratch_operands = 0 : i64, tpu.core_type = #tpu.core_type<tc>, window_params = [{transform_indices = @transform_0, window_bounds = array<i64: 8, 2>}, {pipeline_mode = #tpu.pipeline_mode<synchronous>, transform_indices = @transform_1, window_bounds = array<i64: 1, 30>}, {transform_indices = @transform_2, window_bounds = array<i64: 1, 1>}, {transform_indices = @transform_3, window_bounds = array<i64: 1, 2>}]} {
    %0 = tpu.iota {dimensions = array<i32: 0>} : vector<30x2xi32>
    %cst = arith.constant 0.000000e+00 : f32
    %1 = vector.broadcast %cst : f32 to vector<30x2xf32>
    %c0_i32 = arith.constant 0 : i32
    %2 = arith.index_cast %c0_i32 : i32 to index
    %c0 = arith.constant 0 : index
    %3 = vector.load %arg1[%2, %c0] : memref<8x2xi32, #tpu.memory_space<vmem>>, vector<1x2xi32>
    %4 = vector.broadcast %3 : vector<1x2xi32> to vector<30x2xi32>
    %5 = arith.cmpi eq, %0, %4 : vector<30x2xi32>
    %6 = arith.extui %5 : vector<30x2xi1> to vector<30x2xi32>
    %7 = arith.sitofp %6 : vector<30x2xi32> to vector<30x2xf32>
    %8 = arith.addf %1, %7 : vector<30x2xf32>
    %c1_i32 = arith.constant 1 : i32
    %9 = arith.index_cast %c1_i32 : i32 to index
    %c0_0 = arith.constant 0 : index
    %10 = vector.load %arg1[%9, %c0_0] : memref<8x2xi32, #tpu.memory_space<vmem>>, vector<1x2xi32>
    %11 = vector.broadcast %10 : vector<1x2xi32> to vector<30x2xi32>
    %12 = arith.cmpi eq, %0, %11 : vector<30x2xi32>
    %13 = arith.extui %12 : vector<30x2xi1> to vector<30x2xi32>
    %14 = arith.sitofp %13 : vector<30x2xi32> to vector<30x2xf32>
    %15 = arith.addf %8, %14 : vector<30x2xf32>
    %c2_i32 = arith.constant 2 : i32
    %16 = arith.index_cast %c2_i32 : i32 to index
    %c0_1 = arith.constant 0 : index
    %17 = vector.load %arg1[%16, %c0_1] : memref<8x2xi32, #tpu.memory_space<vmem>>, vector<1x2xi32>
    %18 = vector.broadcast %17 : vector<1x2xi32> to vector<30x2xi32>
    %19 = arith.cmpi eq, %0, %18 : vector<30x2xi32>
    %20 = arith.extui %19 : vector<30x2xi1> to vector<30x2xi32>
    %21 = arith.sitofp %20 : vector<30x2xi32> to vector<30x2xf32>
    %22 = arith.addf %15, %21 : vector<30x2xf32>
    %c3_i32 = arith.constant 3 : i32
    %23 = arith.index_cast %c3_i32 : i32 to index
    %c0_2 = arith.constant 0 : index
    %24 = vector.load %arg1[%23, %c0_2] : memref<8x2xi32, #tpu.memory_space<vmem>>, vector<1x2xi32>
    %25 = vector.broadcast %24 : vector<1x2xi32> to vector<30x2xi32>
    %26 = arith.cmpi eq, %0, %25 : vector<30x2xi32>
    %27 = arith.extui %26 : vector<30x2xi1> to vector<30x2xi32>
    %28 = arith.sitofp %27 : vector<30x2xi32> to vector<30x2xf32>
    %29 = arith.addf %22, %28 : vector<30x2xf32>
    %c4_i32 = arith.constant 4 : i32
    %30 = arith.index_cast %c4_i32 : i32 to index
    %c0_3 = arith.constant 0 : index
    %31 = vector.load %arg1[%30, %c0_3] : memref<8x2xi32, #tpu.memory_space<vmem>>, vector<1x2xi32>
    %32 = vector.broadcast %31 : vector<1x2xi32> to vector<30x2xi32>
    %33 = arith.cmpi eq, %0, %32 : vector<30x2xi32>
    %34 = arith.extui %33 : vector<30x2xi1> to vector<30x2xi32>
    %35 = arith.sitofp %34 : vector<30x2xi32> to vector<30x2xf32>
    %36 = arith.addf %29, %35 : vector<30x2xf32>
    %c5_i32 = arith.constant 5 : i32
    %37 = arith.index_cast %c5_i32 : i32 to index
    %c0_4 = arith.constant 0 : index
    %38 = vector.load %arg1[%37, %c0_4] : memref<8x2xi32, #tpu.memory_space<vmem>>, vector<1x2xi32>
    %39 = vector.broadcast %38 : vector<1x2xi32> to vector<30x2xi32>
    %40 = arith.cmpi eq, %0, %39 : vector<30x2xi32>
    %41 = arith.extui %40 : vector<30x2xi1> to vector<30x2xi32>
    %42 = arith.sitofp %41 : vector<30x2xi32> to vector<30x2xf32>
    %43 = arith.addf %36, %42 : vector<30x2xf32>
    %c6_i32 = arith.constant 6 : i32
    %44 = arith.index_cast %c6_i32 : i32 to index
    %c0_5 = arith.constant 0 : index
    %45 = vector.load %arg1[%44, %c0_5] : memref<8x2xi32, #tpu.memory_space<vmem>>, vector<1x2xi32>
    %46 = vector.broadcast %45 : vector<1x2xi32> to vector<30x2xi32>
    %47 = arith.cmpi eq, %0, %46 : vector<30x2xi32>
    %48 = arith.extui %47 : vector<30x2xi1> to vector<30x2xi32>
    %49 = arith.sitofp %48 : vector<30x2xi32> to vector<30x2xf32>
    %50 = arith.addf %43, %49 : vector<30x2xf32>
    %c7_i32 = arith.constant 7 : i32
    %51 = arith.index_cast %c7_i32 : i32 to index
    %c0_6 = arith.constant 0 : index
    %52 = vector.load %arg1[%51, %c0_6] : memref<8x2xi32, #tpu.memory_space<vmem>>, vector<1x2xi32>
    %53 = vector.broadcast %52 : vector<1x2xi32> to vector<30x2xi32>
    %54 = arith.cmpi eq, %0, %53 : vector<30x2xi32>
    %55 = arith.extui %54 : vector<30x2xi1> to vector<30x2xi32>
    %56 = arith.sitofp %55 : vector<30x2xi32> to vector<30x2xf32>
    %57 = arith.addf %50, %56 : vector<30x2xf32>
    %c8_i32 = arith.constant 8 : i32
    %c0_7 = arith.constant 0 : index
    %c0_8 = arith.constant 0 : index
    %58 = vector.load %arg2[%c0_7, %c0_8] : memref<1x30xf32, #tpu.memory_space<vmem>>, vector<1x30xf32>
    %cst_9 = arith.constant dense<0.000000e+00> : vector<1x2xf32>
    %59 = tpu.matmul %58, %57, %cst_9 {dimension_numbers = #tpu.dot_dimension_numbers<[1], [0], [0], [1], [0, 0, 1, 1], [], []>} : vector<1x30xf32>, vector<30x2xf32>, vector<1x2xf32> -> vector<1x2xf32>
    %c0_10 = arith.constant 0 : index
    %c0_11 = arith.constant 0 : index
    %60 = memref.load %arg3[%c0_10, %c0_11] : memref<1x1xf32, #tpu.memory_space<smem>>
    %61 = vector.broadcast %60 : f32 to vector<1x2xf32>
    %62 = arith.addf %59, %61 : vector<1x2xf32>
    %63 = arith.negf %62 : vector<1x2xf32>
    %64 = math.exp %63 : vector<1x2xf32>
    %cst_12 = arith.constant 1.000000e+00 : f32
    %65 = vector.broadcast %cst_12 : f32 to vector<1x2xf32>
    %66 = arith.addf %65, %64 : vector<1x2xf32>
    %67 = arith.divf %65, %66 : vector<1x2xf32>
    %c0_13 = arith.constant 0 : index
    %c0_14 = arith.constant 0 : index
    %68 = vector.load %arg4[%c0_13, %c0_14] : memref<1x2xf32, #tpu.memory_space<vmem>>, vector<1x2xf32>
    tpu.vector_store %arg4[%c0_13, %c0_14], %67 {strides = array<i32>} : memref<1x2xf32, #tpu.memory_space<vmem>>, vector<1x2xf32>,
    return
  }
  func.func @transform_0(%arg0: i32) -> (i32, i32) {
    %c0_i32 = arith.constant 0 : i32
    %c0_i32_0 = arith.constant 0 : i32
    return %c0_i32, %arg0 : i32, i32
  }
  func.func @transform_1(%arg0: i32) -> (i32, i32) {
    %c0_i32 = arith.constant 0 : i32
    %c0_i32_0 = arith.constant 0 : i32
    %c0_i32_1 = arith.constant 0 : i32
    return %c0_i32, %c0_i32_0 : i32, i32
  }
  func.func @transform_2(%arg0: i32) -> (i32, i32) {
    %c0_i32 = arith.constant 0 : i32
    %c0_i32_0 = arith.constant 0 : i32
    %c0_i32_1 = arith.constant 0 : i32
    return %c0_i32, %c0_i32_0 : i32, i32
  }
  func.func @transform_3(%arg0: i32) -> (i32, i32) {
    %c0_i32 = arith.constant 0 : i32
    %c0_i32_0 = arith.constant 0 : i32
    return %c0_i32, %arg0 : i32, i32
  }
}

</mosaic_0001>

<llo_original>
// kernel: tpu_custom_call.1
$region0: #{tpu_custom_call.1}
  #allocation0 [shape = 'u32[]', space=smem, size = 0x4, offset = 0x4, fixed_abs, tag = 'smem constant byte address 0x4 - core index']
  #allocation1 [shape = 'u32[72,128]{1,0:T(1,128)}', space=vmem, size = 0x9000, scoped, tag = 'internal scratch']
  #allocation2 [shape = 'f32[1,1]{1,0:T(1,128)S(6)}', space=smem, size = 0x200, scoped, tag = 'scoped memory for tpu_custom_call.1']
  %s0 = inlined_call_operand.vmem [shape: s32[8,2], index: 0, kind: input, shape index: {}]
  %s1 = inlined_call_operand.vmem [shape: f32[1,30], index: 1, kind: input, shape index: {}]
  %s2 = inlined_call_operand.<no memory space> [shape: f32[1,1], index: 2, kind: input, shape index: {}]
  %s3 = inlined_call_operand.hbm [shape: f32[1,2], index: 3, kind: output, shape index: {}]
  %s4 = sld [smem:[#allocation0]]
  $region22: #{tpu_custom_call.1} parent=0
    _
  %s6 = ssub.s32 1, %s4
  %s7 = scalar_select 0, %s6, %s4
  %8 = sst [smem:[#allocation2]] %s2
  $region1: #{tpu_custom_call.1} parent=0
    #allocation3 [shape = 'u8[512]{0}', space=vmem, size = 0x400, scoped, tag = 'output window, operand 0, single buffered']
    #allocation4 [shape = 's32[1]{0}', space=sflag, size = 0x4, scoped, tag = 'scoped memory for tpu_custom_call.1']
    %9 = vsyncpa [#allocation4], 0
    // Predicated region
    $region2: #{tpu_custom_call.1} parent=1 // pred_check
      _
    $region3: #{tpu_custom_call.1} parent=1 // pred_check_branch
      %11 = sbr.rel (0) target = $region5
    $region4: #{tpu_custom_call.1} parent=1 // pred_region
      _
    $region5: #{tpu_custom_call.1} parent=1 // pred_fallthru
      _
    // Predicated region
    $region6: #{tpu_custom_call.1} parent=1 // pred_check
      _
    $region7: #{tpu_custom_call.1} parent=1 // pred_check_branch
      %13 = sbr.rel (0) target = $region9
    $region8: #{tpu_custom_call.1} parent=1 // pred_region
      _
    $region9: #{tpu_custom_call.1} parent=1 // pred_fallthru
      _
    // Predicated region
    $region10: #{tpu_custom_call.1} parent=1 // pred_check
      _
    $region11: #{tpu_custom_call.1} parent=1 // pred_check_branch
      %15 = sbr.rel (0) target = $region13
    $region12: #{tpu_custom_call.1} parent=1 // pred_region
      _
    $region13: #{tpu_custom_call.1} parent=1 // pred_fallthru
      _
    %v16 = vlaneseq
    %v17 = vshrl.u32 %v16, 7
    %v18 = vadd.s32 %v17, 8
    %v19 = vadd.s32 %v17, 16
    %v20 = vadd.s32 %v17, 24
    %v21 = vld [vmem:[%s0] sm:$0x1]
    %v22 = vperm.slane %v21, 0
    %vm23 = vcmp.eq.s32.totalorder %v17, %v22
    %vm24 = vcmp.eq.s32.totalorder %v18, %v22
    %vm25 = vcmp.eq.s32.totalorder %v19, %v22
    %vm26 = vcmp.eq.s32.totalorder %v20, %v22
    %v27 = vsel %vm23, 1, 0
    %v28 = vsel %vm24, 1, 0
    %v29 = vsel %vm25, 1, 0
    %v30 = vsel %vm26, 1, 0
    %v31 = vcvt.s32.f32 %v27
    %v32 = vcvt.s32.f32 %v28
    %v33 = vcvt.s32.f32 %v29
    %v34 = vcvt.s32.f32 %v30
    %v35 = vadd.f32 %v31, 0.0
    %v36 = vadd.f32 %v32, 0.0
    %v37 = vadd.f32 %v33, 0.0
    %v38 = vadd.f32 %v34, 0.0
    %v39 = vld [vmem:[%s0 + $0x1] sm:$0x1]
    %v40 = vperm.slane %v39, 0
    %vm41 = vcmp.eq.s32.totalorder %v17, %v40
    %vm42 = vcmp.eq.s32.totalorder %v18, %v40
    %vm43 = vcmp.eq.s32.totalorder %v19, %v40
    %vm44 = vcmp.eq.s32.totalorder %v20, %v40
    %v45 = vsel %vm41, 1, 0
    %v46 = vsel %vm42, 1, 0
    %v47 = vsel %vm43, 1, 0
    %v48 = vsel %vm44, 1, 0
    %v49 = vcvt.s32.f32 %v45
    %v50 = vcvt.s32.f32 %v46
    %v51 = vcvt.s32.f32 %v47
    %v52 = vcvt.s32.f32 %v48
    %v53 = vadd.f32 %v35, %v49
    %v54 = vadd.f32 %v36, %v50
    %v55 = vadd.f32 %v37, %v51
    %v56 = vadd.f32 %v38, %v52
    %v57 = vld [vmem:[%s0 + $0x2] sm:$0x1]
    %v58 = vperm.slane %v57, 0
    %vm59 = vcmp.eq.s32.totalorder %v17, %v58
    %vm60 = vcmp.eq.s32.totalorder %v18, %v58
    %vm61 = vcmp.eq.s32.totalorder %v19, %v58
    %vm62 = vcmp.eq.s32.totalorder %v20, %v58
    %v63 = vsel %vm59, 1, 0
    %v64 = vsel %vm60, 1, 0
    %v65 = vsel %vm61, 1, 0
    %v66 = vsel %vm62, 1, 0
    %v67 = vcvt.s32.f32 %v63
    %v68 = vcvt.s32.f32 %v64
    %v69 = vcvt.s32.f32 %v65
    %v70 = vcvt.s32.f32 %v66
    %v71 = vadd.f32 %v53, %v67
    %v72 = vadd.f32 %v54, %v68
    %v73 = vadd.f32 %v55, %v69
    %v74 = vadd.f32 %v56, %v70
    %v75 = vld [vmem:[%s0 + $0x3] sm:$0x1]
    %v76 = vperm.slane %v75, 0
    %vm77 = vcmp.eq.s32.totalorder %v17, %v76
    %vm78 = vcmp.eq.s32.totalorder %v18, %v76
    %vm79 = vcmp.eq.s32.totalorder %v19, %v76
    %vm80 = vcmp.eq.s32.totalorder %v20, %v76
    %v81 = vsel %vm77, 1, 0
    %v82 = vsel %vm78, 1, 0
    %v83 = vsel %vm79, 1, 0
    %v84 = vsel %vm80, 1, 0
    %v85 = vcvt.s32.f32 %v81
    %v86 = vcvt.s32.f32 %v82
    %v87 = vcvt.s32.f32 %v83
    %v88 = vcvt.s32.f32 %v84
    %v89 = vadd.f32 %v71, %v85
    %v90 = vadd.f32 %v72, %v86
    %v91 = vadd.f32 %v73, %v87
    %v92 = vadd.f32 %v74, %v88
    %v93 = vld [vmem:[%s0 + $0x4] sm:$0x1]
    %v94 = vperm.slane %v93, 0
    %vm95 = vcmp.eq.s32.totalorder %v17, %v94
    %vm96 = vcmp.eq.s32.totalorder %v18, %v94
    %vm97 = vcmp.eq.s32.totalorder %v19, %v94
    %vm98 = vcmp.eq.s32.totalorder %v20, %v94
    %v99 = vsel %vm95, 1, 0
    %v100 = vsel %vm96, 1, 0
    %v101 = vsel %vm97, 1, 0
    %v102 = vsel %vm98, 1, 0
    %v103 = vcvt.s32.f32 %v99
    %v104 = vcvt.s32.f32 %v100
    %v105 = vcvt.s32.f32 %v101
    %v106 = vcvt.s32.f32 %v102
    %v107 = vadd.f32 %v89, %v103
    %v108 = vadd.f32 %v90, %v104
    %v109 = vadd.f32 %v91, %v105
    %v110 = vadd.f32 %v92, %v106
    %v111 = vld [vmem:[%s0 + $0x5] sm:$0x1]
    %v112 = vperm.slane %v111, 0
    %vm113 = vcmp.eq.s32.totalorder %v17, %v112
    %vm114 = vcmp.eq.s32.totalorder %v18, %v112
    %vm115 = vcmp.eq.s32.totalorder %v19, %v112
    %vm116 = vcmp.eq.s32.totalorder %v20, %v112
    %v117 = vsel %vm113, 1, 0
    %v118 = vsel %vm114, 1, 0
    %v119 = vsel %vm115, 1, 0
    %v120 = vsel %vm116, 1, 0
    %v121 = vcvt.s32.f32 %v117
    %v122 = vcvt.s32.f32 %v118
    %v123 = vcvt.s32.f32 %v119
    %v124 = vcvt.s32.f32 %v120
    %v125 = vadd.f32 %v107, %v121
    %v126 = vadd.f32 %v108, %v122
    %v127 = vadd.f32 %v109, %v123
    %v128 = vadd.f32 %v110, %v124
    %v129 = vld [vmem:[%s0 + $0x6] sm:$0x1]
    %v130 = vperm.slane %v129, 0
    %vm131 = vcmp.eq.s32.totalorder %v17, %v130
    %vm132 = vcmp.eq.s32.totalorder %v18, %v130
    %vm133 = vcmp.eq.s32.totalorder %v19, %v130
    %vm134 = vcmp.eq.s32.totalorder %v20, %v130
    %v135 = vsel %vm131, 1, 0
    %v136 = vsel %vm132, 1, 0
    %v137 = vsel %vm133, 1, 0
    %v138 = vsel %vm134, 1, 0
    %v139 = vcvt.s32.f32 %v135
    %v140 = vcvt.s32.f32 %v136
    %v141 = vcvt.s32.f32 %v137
    %v142 = vcvt.s32.f32 %v138
    %v143 = vadd.f32 %v125, %v139
    %v144 = vadd.f32 %v126, %v140
    %v145 = vadd.f32 %v127, %v141
    %v146 = vadd.f32 %v128, %v142
    %v147 = vld [vmem:[%s0 + $0x7] sm:$0x1]
    %v148 = vperm.slane %v147, 0
    %vm149 = vcmp.eq.s32.totalorder %v17, %v148
    %vm150 = vcmp.eq.s32.totalorder %v18, %v148
    %vm151 = vcmp.eq.s32.totalorder %v19, %v148
    %vm152 = vcmp.eq.s32.totalorder %v20, %v148
    %v153 = vsel %vm149, 1, 0
    %v154 = vsel %vm150, 1, 0
    %v155 = vsel %vm151, 1, 0
    %v156 = vsel %vm152, 1, 0
    %v157 = vcvt.s32.f32 %v153
    %v158 = vcvt.s32.f32 %v154
    %v159 = vcvt.s32.f32 %v155
    %v160 = vcvt.s32.f32 %v156
    %v161 = vadd.f32 %v143, %v157
    %v162 = vadd.f32 %v144, %v158
    %v163 = vadd.f32 %v145, %v159
    %v164 = vadd.f32 %v146, %v160
    %v165 = vld [vmem:[%s1] sm:$0x1]
    %s166 = sld [smem:[#allocation2]]
    %v167 = vstv %s166
    %vm168 = vcmask 244736
    %v170 = vsel %vm168, %v165, 0
    %vm172 = vcmask 1045504
    %v174 = vsel %vm172, %v164, 0
    %176 = vmatpush.msra.mxu0 0.0
    %177 = vmatpush.msra.mxu0 0.0
    %178 = vmatpush.msra.mxu0 0.0
    %179 = vmatpush.msra.mxu0 0.0
    %180 = vmatpush.msra.mxu0 0.0
    %181 = vmatpush.msra.mxu0 0.0
    %182 = vmatpush.msra.mxu0 0.0
    %183 = vmatpush.msra.mxu0 0.0
    %184 = vmatpush.msra.mxu0 0.0
    %185 = vmatpush.msra.mxu0 0.0
    %186 = vmatpush.msra.mxu0 0.0
    %187 = vmatpush.msra.mxu0 0.0
    %188 = vmatpush.msra.mxu0 %v174
    %189 = vmatpush.msra.mxu0 %v163
    %190 = vmatpush.msra.mxu0 %v162
    %191 = vmatpush.msra.mxu0 %v161
    %192 = vmatmul.f32.gmra.mxu0 %v170
    %v193 = vpop.f32.mrf.mxu0
    %v194 = vadd.f32 %v167, %v193
    %195 = vdwg.mxu0
    %v196 = vxor.u32 %v194, 2147483648
    %v197 = vmul.f32 %v196, 1.442695
    %v198 = vpow.pop %v197
    %v199 = vadd.f32 %v198, 1.0
    %v200 = vrcp.pop %v199
    %v201 = vmul.f32 %v199, %v200
    %v202 = vsub.f32 1.0, %v201
    %v203 = vmul.f32 %v200, %v202
    %v204 = vadd.f32 %v200, %v203
    %vm205 = vweird.f32 %v199
    %vm206 = vweird.f32 %v200
    %vm207 = vmor %vm205, %vm206
    %v208 = vsel %vm207, %v200, %v204
    %v209 = vand.u32 2147483647, %v199
    %vm210 = vcmp.eq.f32.partialorder %v209, 8.507059e+37
    %v211 = vand.u32 %v199, 2147483648
    %v212 = vor.u32 1.1754944e-38, %v211
    %v213 = vsel %vm210, %v212, %v208
    %v214 = vmul.f32 1.0, %v213
    %vm215 = vcmask 8192
    %216 = vst.msk [vmem:[#allocation3] sm:$0x1] %vm215, %v214
    // Predicated region
    $region14: #{tpu_custom_call.1} parent=1 // pred_check
      _
    $region15: #{tpu_custom_call.1} parent=1 // pred_check_branch
      %218 = sbr.rel (0) target = $region17
    $region16: #{tpu_custom_call.1} parent=1 // pred_region
      %220 = vsyncadd [#allocation4], 0
      %s222 = sshll.u32 [#allocation3], 4
      %s223 = int_to_ptr.vmem [resolvable:$true] %s222
      %s224 = sshll.u32 %s3, 4
      %s225 = int_to_ptr.hbm [resolvable:$true] %s224
      %227 = dma.vmem_to_hbm [thread:$0]  %s223, 16, %s225, [#allocation4]
    $region17: #{tpu_custom_call.1} parent=1 // pred_fallthru
      _
    // Predicated region
    $region18: #{tpu_custom_call.1} parent=1 // pred_check
      _
    $region19: #{tpu_custom_call.1} parent=1 // pred_check_branch
      %229 = sbr.rel (0) target = $region21
    $region20: #{tpu_custom_call.1} parent=1 // pred_region
      %231 = dma.done [#allocation4], 16
    $region21: #{tpu_custom_call.1} parent=1 // pred_fallthru
      _
    %232 = vsyncpa [#allocation4], 1

</llo_original>
